<compile_context>
chip_gen: v7x
topology: tpu7x:2x2x1
jax: 0.10.0
libtpu: 0.0.40
codegen_flags: <defaults>
</compile_context>

<pallas_src>
from functools import partial

import jax
import jax.numpy as jnp
from jax.experimental import pallas as pl
from jax.experimental.pallas import tpu as pltpu


def _round_up(x, m):
    return ((x + m - 1) // m) * m


def _patch_embed_kernel(x_ref, w_ref, b_ref, o_ref):
    # x_ref: (tm, K)  bf16 patch rows, K = C*ph*pw (true extent, no padding)
    # w_ref: (K, Ep)  bf16 projection weight (block index constant -> resident)
    # b_ref: (1, Ep)  f32 bias
    # o_ref: (tm, Ep) bf16 output tile (Ep multiple of 128 -> dense vst)
    acc = jnp.dot(x_ref[...], w_ref[...], preferred_element_type=jnp.float32)
    o_ref[...] = (acc + b_ref[...]).astype(o_ref.dtype)


def _choose_tile_m(M):
    # Largest tile giving >= 8 grid steps (amortizes ~0.35us/step, splits
    # evenly-ish across v7x's 2 TensorCores); else largest with >= 2 steps;
    # else a single step over the whole M (a block dim equal to the full array
    # dim needs no (8,128) alignment, and ragged tails are masked).
    for cand in (1024, 512, 256, 128):
        if pl.cdiv(M, cand) >= 8:
            return cand
    for cand in (1024, 512, 256, 128):
        if pl.cdiv(M, cand) >= 2:
            return cand
    return None


def prepare_patch_embed_params(weight, bias):
    """One-time (model-init) transform of Conv2d params to GEMM layout.

    weight: [E, C, ph, pw] -> [K, Ep] bf16  (K = C*ph*pw; Ep = E, or E padded
                                             to a multiple of 128 if needed)
    bias:   [E]            -> [1, Ep] f32
    """
    E = weight.shape[0]
    K = weight.shape[1] * weight.shape[2] * weight.shape[3]
    Ep = E if E % 128 == 0 else _round_up(max(E, 128), 128)
    w_mat = weight.reshape(E, K).T.astype(jnp.bfloat16)   # [K, E], (C, kh, kw) order
    b_mat = bias.reshape(1, E).astype(jnp.float32)        # [1, E]
    if Ep != E:
        w_mat = jnp.pad(w_mat, ((0, 0), (0, Ep - E)))
        b_mat = jnp.pad(b_mat, ((0, 0), (0, Ep - E)))
    return w_mat, b_mat


@partial(jax.jit, static_argnames=("patch_h", "patch_w", "embed_dim"))
def patch_embed(x, w_mat, b_mat, *, patch_h, patch_w, embed_dim):
    """Equivalent of PatchEmbed.forward.

    x:     [B, C, H, W]  (NCHW, like PyTorch)
    w_mat: [K, Ep] bf16, b_mat: [1, Ep] f32  (from prepare_patch_embed_params)
    returns [B, (H//ph)*(W//pw), embed_dim] in bf16 (activation dtype).
    """
    B, C, H, W = x.shape
    ph, pw = patch_h, patch_w
    nh, nw = H // ph, W // pw
    N = nh * nw
    K = C * ph * pw
    E = embed_dim
    Ep = w_mat.shape[1]
    M = B * N
    out_dtype = jnp.bfloat16

    # ---- patch extraction: one fused XLA transpose + bf16 cast --------------
    # K-order inside a patch is (C, kh, kw) to match the Conv2d weight layout;
    # patch order is row-major over (nh, nw) == flatten(2).transpose(1, 2).
    # TODO(synk): fuse this gather into the kernel (slab BlockSpec over NCHW /
    # NHWC input) to remove the remaining extra HBM pass over the activations.
    xp = x.reshape(B, C, nh, ph, nw, pw)
    xp = jnp.transpose(xp, (0, 2, 4, 1, 3, 5)).reshape(M, K).astype(jnp.bfloat16)

    tm = _choose_tile_m(M)
    if tm is None:
        tm = M
    num_steps = pl.cdiv(M, tm)   # ragged last block: OOB output rows are masked

    # ---- VMEM budget: actual buffer sum + 25% headroom ----------------------
    out_bytes = jnp.dtype(out_dtype).itemsize
    need = (2 * tm * K * 2                # streamed activation tiles (x2 bufs)
            + 2 * K * Ep * 2              # resident weight (default x2 bufs)
            + 2 * Ep * 4                  # bias
            + 2 * tm * Ep * out_bytes)    # output tiles (x2 bufs)
    vmem_limit = int(min(max(int(1.25 * need), 16 * 1024 * 1024),
                         40 * 1024 * 1024))
    # TODO(synk): once validated on the target runtime, add pl.Buffered(1) to
    # the w_mat/b_mat specs (constant block index) to reclaim one weight buffer
    # and use pltpu.CORE_PARALLEL for the M axis on v7x.

    out = pl.pallas_call(
        _patch_embed_kernel,
        out_shape=jax.ShapeDtypeStruct((M, Ep), out_dtype),
        grid_spec=pltpu.PrefetchScalarGridSpec(
            num_scalar_prefetch=0,
            grid=(num_steps,),
            in_specs=[
                pl.BlockSpec((tm, K), lambda i: (i, 0)),
                pl.BlockSpec((K, Ep), lambda i: (0, 0)),
                pl.BlockSpec((1, Ep), lambda i: (0, 0)),
            ],
            out_specs=pl.BlockSpec((tm, Ep), lambda i: (i, 0)),
        ),
        compiler_params=pltpu.CompilerParams(
            dimension_semantics=("parallel",),
            vmem_limit_bytes=vmem_limit,
        ),
        cost_estimate=pl.CostEstimate(
            flops=2 * M * K * Ep,
            transcendentals=0,
            bytes_accessed=(M * K * 2 + K * Ep * 2 + Ep * 4
                            + M * Ep * out_bytes),
        ),
    )(xp, w_mat, b_mat)

    if Ep != E:
        out = out[:, :E]
    return out.reshape(B, N, E)


if __name__ == "__main__":
    # Small shapes consistent with the module:
    # input 16x16, patch 2x2, in_chans 4, embed_dim 32, batch 2.
    B, C, H, W = 2, 4, 16, 16
    ph, pw = 2, 2
    E = 32

    key = jax.random.PRNGKey(0)
    kx, kw, kb = jax.random.split(key, 3)
    x = jax.random.normal(kx, (B, C, H, W), dtype=jnp.float32)
    # Deterministic synthetic Conv2d(in_chans, embed_dim, kernel=patch, stride=patch) params.
    weight = jax.random.normal(kw, (E, C, ph, pw), dtype=jnp.float32) * 0.02
    bias = jax.random.normal(kb, (E,), dtype=jnp.float32) * 0.02

    # One-time init transform (in a real model this lives at module init).
    w_mat, b_mat = prepare_patch_embed_params(weight, bias)

    y = patch_embed(x, w_mat, b_mat, patch_h=ph, patch_w=pw, embed_dim=E)
    y = jax.block_until_ready(y)

    # sanity: plain-JAX f32 reference of the same conv-as-matmul
    # (kernel uses bf16 operands/output -> loosened tolerance).
    nh, nw = H // ph, W // pw
    xp_ref = jnp.transpose(x.reshape(B, C, nh, ph, nw, pw),
                           (0, 2, 4, 1, 3, 5)).reshape(B, nh * nw, -1)
    ref = xp_ref @ weight.reshape(E, -1).T + bias
    assert y.shape == (B, nh * nw, E)
    assert y.dtype == jnp.bfloat16
    assert jnp.allclose(y.astype(jnp.float32), ref, atol=2e-2, rtol=2e-2)

    print("KERNEL_OK")
</pallas_src>

<mosaic_0001>
module attributes {stable_mosaic.version = 11 : i64} {
  func.func @_patch_embed_kernel(%arg0: i32, %arg1: memref<128x16xbf16, #tpu.memory_space<vmem>>, %arg2: memref<16x128xbf16, #tpu.memory_space<vmem>>, %arg3: memref<1x128xf32, #tpu.memory_space<vmem>>, %arg4: memref<128x128xbf16, #tpu.memory_space<vmem>>) attributes {dimension_semantics = [#tpu.dimension_semantics<parallel>], iteration_bounds = array<i64: 1>, scalar_prefetch = 0 : i64, scratch_operands = 0 : i64, tpu.core_type = #tpu.core_type<tc>, window_params = [{transform_indices = @transform_0, window_bounds = array<i64: 128, 16>}, {pipeline_mode = #tpu.pipeline_mode<synchronous>, transform_indices = @transform_1, window_bounds = array<i64: 16, 128>}, {pipeline_mode = #tpu.pipeline_mode<synchronous>, transform_indices = @transform_2, window_bounds = array<i64: 1, 128>}, {transform_indices = @transform_3, window_bounds = array<i64: 128, 128>}]} {
    %c0 = arith.constant 0 : index
    %c0_0 = arith.constant 0 : index
    %0 = vector.load %arg1[%c0, %c0_0] : memref<128x16xbf16, #tpu.memory_space<vmem>>, vector<128x16xbf16>
    %c0_1 = arith.constant 0 : index
    %c0_2 = arith.constant 0 : index
    %1 = vector.load %arg2[%c0_1, %c0_2] : memref<16x128xbf16, #tpu.memory_space<vmem>>, vector<16x128xbf16>
    %cst = arith.constant dense<0.000000e+00> : vector<128x128xf32>
    %2 = tpu.matmul %0, %1, %cst {dimension_numbers = #tpu.dot_dimension_numbers<[1], [0], [0], [1], [0, 0, 1, 1], [], []>} : vector<128x16xbf16>, vector<16x128xbf16>, vector<128x128xf32> -> vector<128x128xf32>
    %c0_3 = arith.constant 0 : index
    %c0_4 = arith.constant 0 : index
    %3 = vector.load %arg3[%c0_3, %c0_4] : memref<1x128xf32, #tpu.memory_space<vmem>>, vector<1x128xf32>
    %4 = vector.broadcast %3 : vector<1x128xf32> to vector<128x128xf32>
    %5 = arith.addf %2, %4 : vector<128x128xf32>
    %6 = arith.truncf %5 : vector<128x128xf32> to vector<128x128xbf16>
    %c0_5 = arith.constant 0 : index
    %c0_6 = arith.constant 0 : index
    %7 = vector.load %arg4[%c0_5, %c0_6] : memref<128x128xbf16, #tpu.memory_space<vmem>>, vector<128x128xbf16>
    tpu.vector_store %arg4[%c0_5, %c0_6], %6 {strides = array<i32>} : memref<128x128xbf16, #tpu.memory_space<vmem>>, vector<128x128xbf16>,
    return
  }
  func.func @transform_0(%arg0: i32) -> (i32, i32) {
    %c0_i32 = arith.constant 0 : i32
    %c0_i32_0 = arith.constant 0 : i32
    return %arg0, %c0_i32 : i32, i32
  }
  func.func @transform_1(%arg0: i32) -> (i32, i32) {
    %c0_i32 = arith.constant 0 : i32
    %c0_i32_0 = arith.constant 0 : i32
    %c0_i32_1 = arith.constant 0 : i32
    return %c0_i32, %c0_i32_0 : i32, i32
  }
  func.func @transform_2(%arg0: i32) -> (i32, i32) {
    %c0_i32 = arith.constant 0 : i32
    %c0_i32_0 = arith.constant 0 : i32
    %c0_i32_1 = arith.constant 0 : i32
    return %c0_i32, %c0_i32_0 : i32, i32
  }
  func.func @transform_3(%arg0: i32) -> (i32, i32) {
    %c0_i32 = arith.constant 0 : i32
    %c0_i32_0 = arith.constant 0 : i32
    return %arg0, %c0_i32 : i32, i32
  }
}

</mosaic_0001>

<llo_original>
// kernel: patch_embed.1
$region0: #{patch_embed.1}
  #allocation0 [shape = 'u32[]', space=smem, size = 0x4, offset = 0x4, fixed_abs, tag = 'smem constant byte address 0x4 - core index']
  #allocation1 [shape = 'u32[144,128]{1,0:T(1,128)}', space=vmem, size = 0x12000, scoped, tag = 'internal scratch']
  %s0 = inlined_call_operand.vmem [shape: bf16[128,16], index: 0, kind: input, shape index: {}]
  %s1 = inlined_call_operand.vmem [shape: bf16[16,128], index: 1, kind: input, shape index: {}]
  %s2 = inlined_call_operand.vmem [shape: f32[1,128], index: 2, kind: input, shape index: {}]
  %s3 = inlined_call_operand.vmem [shape: bf16[128,128], index: 3, kind: output, shape index: {}]
  %s4 = sld [smem:[#allocation0]]
  $region22: #{patch_embed.1} parent=0
    _
  %s6 = ssub.s32 1, %s4
  %s7 = scalar_select 0, %s6, %s4
  // Predicated region
  $region2: #{patch_embed.1} parent=0 // pred_check
    _
  $region3: #{patch_embed.1} parent=0 // pred_check_branch
    %9 = sbr.rel (0) target = $region5
  $region4: #{patch_embed.1} parent=0 // pred_region
    _
  $region5: #{patch_embed.1} parent=0 // pred_fallthru
    _
  // Predicated region
  $region6: #{patch_embed.1} parent=0 // pred_check
    _
  $region7: #{patch_embed.1} parent=0 // pred_check_branch
    %11 = sbr.rel (0) target = $region9
  $region8: #{patch_embed.1} parent=0 // pred_region
    _
  $region9: #{patch_embed.1} parent=0 // pred_fallthru
    _
  // Predicated region
  $region10: #{patch_embed.1} parent=0 // pred_check
    _
  $region11: #{patch_embed.1} parent=0 // pred_check_branch
    %13 = sbr.rel (0) target = $region13
  $region12: #{patch_embed.1} parent=0 // pred_region
    _
  $region13: #{patch_embed.1} parent=0 // pred_fallthru
    _
  %v15 = vld [vmem:[%s0] sm:$0xf]
  %v16 = vld [vmem:[%s0 + $0x4] sm:$0xf]
  %v17 = vld [vmem:[%s0 + $0x8] sm:$0xf]
  %v18 = vld [vmem:[%s0 + $0xc] sm:$0xf]
  %v19 = vld [vmem:[%s0 + $0x10] sm:$0xf]
  %v20 = vld [vmem:[%s0 + $0x14] sm:$0xf]
  %v21 = vld [vmem:[%s0 + $0x18] sm:$0xf]
  %v22 = vld [vmem:[%s0 + $0x1c] sm:$0xf]
  %v23 = vld [vmem:[%s0 + $0x20] sm:$0xf]
  %v24 = vld [vmem:[%s0 + $0x24] sm:$0xf]
  %v25 = vld [vmem:[%s0 + $0x28] sm:$0xf]
  %v26 = vld [vmem:[%s0 + $0x2c] sm:$0xf]
  %v27 = vld [vmem:[%s0 + $0x30] sm:$0xf]
  %v28 = vld [vmem:[%s0 + $0x34] sm:$0xf]
  %v29 = vld [vmem:[%s0 + $0x38] sm:$0xf]
  %v30 = vld [vmem:[%s0 + $0x3c] sm:$0xf]
  %v31 = vld [vmem:[%s1] sm:$0xf]
  %v32 = vld [vmem:[%s1 + $0x4] sm:$0xf]
  %v33 = vld [vmem:[%s2] sm:$0x1]
  %v35 = vlaneseq
  %v36 = vshrl.u32 %v35, 7
  %v37 = vsub.s32 0, %v36
  %v38 = vrot.slane %v33, %v37
  %v56 = vunpack.c.l.b16 %v15
  %v57 = vunpack.c.l.b16 %v16
  %v58 = vunpack.c.l.b16 %v17
  %v59 = vunpack.c.l.b16 %v18
  %v60 = vunpack.c.l.b16 %v19
  %v61 = vunpack.c.l.b16 %v20
  %v62 = vunpack.c.l.b16 %v21
  %v63 = vunpack.c.l.b16 %v22
  %v64 = vunpack.c.l.b16 %v23
  %v65 = vunpack.c.l.b16 %v24
  %v66 = vunpack.c.l.b16 %v25
  %v67 = vunpack.c.l.b16 %v26
  %v68 = vunpack.c.l.b16 %v27
  %v69 = vunpack.c.l.b16 %v28
  %v70 = vunpack.c.l.b16 %v29
  %v71 = vunpack.c.l.b16 %v30
  %v72 = vpack.c.b16 %v57, %v56
  %v73 = vpack.c.b16 %v59, %v58
  %v74 = vpack.c.b16 %v61, %v60
  %v75 = vpack.c.b16 %v63, %v62
  %v76 = vpack.c.b16 %v65, %v64
  %v77 = vpack.c.b16 %v67, %v66
  %v78 = vpack.c.b16 %v69, %v68
  %v79 = vpack.c.b16 %v71, %v70
  %v82 = vunpack.c.l.b16 %v31
  %v83 = vunpack.c.l.b16 %v32
  %v84 = vpack.c.b16 %v83, %v82
  %vm86 = vcmask 130048
  %v88 = vsel %vm86, %v72, 0
  %v91 = vsel %vm86, %v73, 0
  %v94 = vsel %vm86, %v74, 0
  %v97 = vsel %vm86, %v75, 0
  %v100 = vsel %vm86, %v76, 0
  %v103 = vsel %vm86, %v77, 0
  %v106 = vsel %vm86, %v78, 0
  %v109 = vsel %vm86, %v79, 0
  %111 = vmatprep.subr.bf16.mxu0 0
  %112 = vmatpush1.bf16.msra.mxu0 %v84
  %113 = vmatprep.subr.bf16.mxu0 0
  %114 = vmatpush1.bf16.msra.mxu0 0
  %115 = vmatprep.subr.bf16.mxu0 0
  %116 = vmatpush1.bf16.msra.mxu0 0
  %117 = vmatprep.subr.bf16.mxu0 0
  %118 = vmatpush1.bf16.msra.mxu0 0
  %119 = vmatprep.subr.bf16.mxu0 0
  %120 = vmatpush1.bf16.msra.mxu0 0
  %121 = vmatprep.subr.bf16.mxu0 0
  %122 = vmatpush1.bf16.msra.mxu0 0
  %123 = vmatprep.subr.bf16.mxu0 0
  %124 = vmatpush1.bf16.msra.mxu0 0
  %125 = vmatprep.subr.bf16.mxu0 0
  %126 = vmatpush1.bf16.msra.mxu0 0
  %127 = vmatprep.subr.bf16.mxu0 0
  %128 = vmatpush1.bf16.msra.mxu0 0
  %129 = vmatprep.subr.bf16.mxu0 0
  %130 = vmatpush1.bf16.msra.mxu0 0
  %131 = vmatprep.subr.bf16.mxu0 0
  %132 = vmatpush1.bf16.msra.mxu0 0
  %133 = vmatprep.subr.bf16.mxu0 0
  %134 = vmatpush1.bf16.msra.mxu0 0
  %135 = vmatprep.subr.bf16.mxu0 0
  %136 = vmatpush1.bf16.msra.mxu0 0
  %137 = vmatprep.subr.bf16.mxu0 0
  %138 = vmatpush1.bf16.msra.mxu0 0
  %139 = vmatprep.subr.bf16.mxu0 0
  %140 = vmatpush1.bf16.msra.mxu0 0
  %141 = vmatprep.subr.bf16.mxu0 0
  %142 = vmatpush1.bf16.msra.mxu0 0
  %143 = vmatprep.mubr.bf16.mxu0 0
  %144 = vmatmul.mubr.bf16.gmra.mrb[0].mxu0 %v88
  %v145 = vpop.f32.mrb[0].mxu0
  %v146 = vadd.f32 %v38, %v145
  %v147 = vpop.f32.mrb[0].mxu0
  %v148 = vpop.f32.mrb[0].mxu0
  %v149 = vadd.f32 %v38, %v148
  %v150 = vpop.f32.mrb[0].mxu0
  %151 = vmatprep.mubr.bf16.mxu0 0
  %152 = vmatmul.mubr.bf16.gmra.mrb[0].mxu0 %v91
  %v153 = vpop.f32.mrb[0].mxu0
  %v154 = vadd.f32 %v38, %v153
  %v155 = vpop.f32.mrb[0].mxu0
  %v156 = vpop.f32.mrb[0].mxu0
  %v157 = vadd.f32 %v38, %v156
  %v158 = vpop.f32.mrb[0].mxu0
  %159 = vmatprep.mubr.bf16.mxu0 0
  %160 = vmatmul.mubr.bf16.gmra.mrb[0].mxu0 %v94
  %v161 = vpop.f32.mrb[0].mxu0
  %v162 = vadd.f32 %v38, %v161
  %v163 = vpop.f32.mrb[0].mxu0
  %v164 = vpop.f32.mrb[0].mxu0
  %v165 = vadd.f32 %v38, %v164
  %v166 = vpop.f32.mrb[0].mxu0
  %167 = vmatprep.mubr.bf16.mxu0 0
  %168 = vmatmul.mubr.bf16.gmra.mrb[0].mxu0 %v97
  %v169 = vpop.f32.mrb[0].mxu0
  %v170 = vadd.f32 %v38, %v169
  %v171 = vpop.f32.mrb[0].mxu0
  %v172 = vpop.f32.mrb[0].mxu0
  %v173 = vadd.f32 %v38, %v172
  %v174 = vpop.f32.mrb[0].mxu0
  %175 = vmatprep.mubr.bf16.mxu0 0
  %176 = vmatmul.mubr.bf16.gmra.mrb[0].mxu0 %v100
  %v177 = vpop.f32.mrb[0].mxu0
  %v178 = vadd.f32 %v38, %v177
  %v179 = vpop.f32.mrb[0].mxu0
  %v180 = vpop.f32.mrb[0].mxu0
  %v181 = vadd.f32 %v38, %v180
  %v182 = vpop.f32.mrb[0].mxu0
  %183 = vmatprep.mubr.bf16.mxu0 0
  %184 = vmatmul.mubr.bf16.gmra.mrb[0].mxu0 %v103
  %v185 = vpop.f32.mrb[0].mxu0
  %v186 = vadd.f32 %v38, %v185
  %v187 = vpop.f32.mrb[0].mxu0
  %v188 = vpop.f32.mrb[0].mxu0
  %v189 = vadd.f32 %v38, %v188
  %v190 = vpop.f32.mrb[0].mxu0
  %191 = vmatprep.mubr.bf16.mxu0 0
  %192 = vmatmul.mubr.bf16.gmra.mrb[0].mxu0 %v106
  %v193 = vpop.f32.mrb[0].mxu0
  %v194 = vadd.f32 %v38, %v193
  %v195 = vpop.f32.mrb[0].mxu0
  %v196 = vpop.f32.mrb[0].mxu0
  %v197 = vadd.f32 %v38, %v196
  %v198 = vpop.f32.mrb[0].mxu0
  %199 = vmatprep.mubr.bf16.mxu0 0
  %200 = vmatmul.mubr.bf16.gmra.mrb[0].mxu0 %v109
  %v201 = vpop.f32.mrb[0].mxu0
  %v202 = vadd.f32 %v38, %v201
  %v203 = vpop.f32.mrb[0].mxu0
  %v204 = vpop.f32.mrb[0].mxu0
  %v205 = vadd.f32 %v38, %v204
  %v206 = vpop.f32.mrb[0].mxu0
  %207 = vdwg.mxu0
  %v208 = vpack.c.bf16 %v149, %v146
  %v209 = vpack.c.bf16 %v157, %v154
  %v210 = vpack.c.bf16 %v165, %v162
  %v211 = vpack.c.bf16 %v173, %v170
  %v212 = vpack.c.bf16 %v181, %v178
  %v213 = vpack.c.bf16 %v189, %v186
  %v214 = vpack.c.bf16 %v197, %v194
  %v215 = vpack.c.bf16 %v205, %v202
  %v224 = vunpack.c.l.b16 %v208
  %v225 = vunpack.c.h.b16 %v208
  %v226 = vunpack.c.l.b16 %v209
  %v227 = vunpack.c.h.b16 %v209
  %v228 = vunpack.c.l.b16 %v210
  %v229 = vunpack.c.h.b16 %v210
  %v230 = vunpack.c.l.b16 %v211
  %v231 = vunpack.c.h.b16 %v211
  %v232 = vunpack.c.l.b16 %v212
  %v233 = vunpack.c.h.b16 %v212
  %v234 = vunpack.c.l.b16 %v213
  %v235 = vunpack.c.h.b16 %v213
  %v236 = vunpack.c.l.b16 %v214
  %v237 = vunpack.c.h.b16 %v214
  %v238 = vunpack.c.l.b16 %v215
  %v239 = vunpack.c.h.b16 %v215
  %v240 = vpack.c.b16 %v224, %v224
  %v241 = vpack.c.b16 %v225, %v225
  %v242 = vpack.c.b16 %v226, %v226
  %v243 = vpack.c.b16 %v227, %v227
  %v244 = vpack.c.b16 %v228, %v228
  %v245 = vpack.c.b16 %v229, %v229
  %v246 = vpack.c.b16 %v230, %v230
  %v247 = vpack.c.b16 %v231, %v231
  %v248 = vpack.c.b16 %v232, %v232
  %v249 = vpack.c.b16 %v233, %v233
  %v250 = vpack.c.b16 %v234, %v234
  %v251 = vpack.c.b16 %v235, %v235
  %v252 = vpack.c.b16 %v236, %v236
  %v253 = vpack.c.b16 %v237, %v237
  %v254 = vpack.c.b16 %v238, %v238
  %v255 = vpack.c.b16 %v239, %v239
  %272 = vst [vmem:[%s3] sm:$0xf] %v240
  %273 = vst [vmem:[%s3 + $0x4] sm:$0xf] %v241
  %274 = vst [vmem:[%s3 + $0x8] sm:$0xf] %v242
  %275 = vst [vmem:[%s3 + $0xc] sm:$0xf] %v243
  %276 = vst [vmem:[%s3 + $0x10] sm:$0xf] %v244
  %277 = vst [vmem:[%s3 + $0x14] sm:$0xf] %v245
  %278 = vst [vmem:[%s3 + $0x18] sm:$0xf] %v246
  %279 = vst [vmem:[%s3 + $0x1c] sm:$0xf] %v247
  %280 = vst [vmem:[%s3 + $0x20] sm:$0xf] %v248
  %281 = vst [vmem:[%s3 + $0x24] sm:$0xf] %v249
  %282 = vst [vmem:[%s3 + $0x28] sm:$0xf] %v250
  %283 = vst [vmem:[%s3 + $0x2c] sm:$0xf] %v251
  %284 = vst [vmem:[%s3 + $0x30] sm:$0xf] %v252
  %285 = vst [vmem:[%s3 + $0x34] sm:$0xf] %v253
  %286 = vst [vmem:[%s3 + $0x38] sm:$0xf] %v254
  %287 = vst [vmem:[%s3 + $0x3c] sm:$0xf] %v255
  // Predicated region
  $region14: #{patch_embed.1} parent=0 // pred_check
    _
  $region15: #{patch_embed.1} parent=0 // pred_check_branch
    %289 = sbr.rel (0) target = $region17
  $region16: #{patch_embed.1} parent=0 // pred_region
    _
  $region17: #{patch_embed.1} parent=0 // pred_fallthru
    _
  // Predicated region
  $region18: #{patch_embed.1} parent=0 // pred_check
    _
  $region19: #{patch_embed.1} parent=0 // pred_check_branch
    %291 = sbr.rel (0) target = $region21
  $region20: #{patch_embed.1} parent=0 // pred_region
    _
  $region21: #{patch_embed.1} parent=0 // pred_fallthru
    _

</llo_original>
